<compile_context>
chip_gen: v5e
topology: v5e:2x2
jax: 0.10.0
libtpu: 0.0.40
codegen_flags: <defaults>
</compile_context>

<pallas_src>
import jax
import jax.numpy as jnp
from jax.experimental import pallas as pl
from jax.experimental.pallas import tpu as pltpu

EPS = 0.01
PI = 3.141592653589793


def project_pts_kernel(m_ref, st_ref, ct_ref, sp_ref, cp_ref, pts_ref, out_ref):
    """One grid step processes a (TH, W) tile of points.

    m_ref   : (4, 4)  f32 SMEM  -- composed K @ (RT_cam2 @ RTinv_cam1) @ K_inv
    st_ref  : (1, W)  f32 VMEM  -- sin(theta) column strip
    ct_ref  : (1, W)  f32 VMEM  -- cos(theta) column strip
    sp_ref  : (TH, 1) f32 VMEM  -- sin(phi) row strip for this tile
    cp_ref  : (TH, 1) f32 VMEM  -- cos(phi) row strip for this tile
    pts_ref : (TH, W) f32 VMEM  -- predicted depth
    out_ref : (3, TH, W) f32 VMEM -- sampler channels (u, v, normXYZ)
    """
    depth = pts_ref[...]                        # (TH, W)
    stheta = st_ref[...]                        # (1, W)
    ctheta = ct_ref[...]                        # (1, W)
    sphi = sp_ref[...]                          # (TH, 1)
    cphi = cp_ref[...]                          # (TH, 1)

    # projected_coors = xyzs * depth  (homogeneous row forced to 1 -> bias below).
    # Pure broadcast multiplies on the VPU; no transcendentals here.
    p0 = (cphi * stheta) * depth                # x * d
    p1 = sphi * depth                           # y * d
    p2 = (cphi * ctheta) * depth                # z * d

    # Pre-composed camera chain as a 3x4 matvec-with-bias (rows 0..2 only).
    def mrow(r):
        return (m_ref[r, 0] * p0 + m_ref[r, 1] * p1
                + m_ref[r, 2] * p2 + m_ref[r, 3])

    x0 = mrow(0)
    x1 = mrow(1)
    x2 = mrow(2)

    sq_xz = x0 * x0 + x2 * x2
    norm_xy = jnp.sqrt(sq_xz)
    norm_xyz = jnp.sqrt(sq_xz + x1 * x1)
    small = norm_xyz < EPS

    # u = asin(x0/normXY) + neg-z quadrant fixups  == atan2(x0, x2)
    # v = asin(x1/normXYZ)                         == atan2(x1, normXY)
    u = jnp.arctan2(x0, x2)
    v = jnp.arctan2(x1, norm_xy)

    # torch: sampler = cat(u/-1*2, v/-1, normXYZ); masked -> -10; then * [1,-1,1]
    # (mask is applied BEFORE the final scale, so the masked channel-1 value is +10).
    out_ref[0] = jnp.where(small, -10.0, u * (-2.0 / PI))
    out_ref[1] = jnp.where(small, 10.0, v * (2.0 / PI))
    out_ref[2] = jnp.where(small, -10.0, norm_xyz)


def make_xyzs(H, W):
    """Reference-only: the xyzs buffer from the torch __init__, shape (1, 4, H*W)."""
    cen_x = (W - 1) / 2.0
    cen_y = (H - 1) / 2.0
    theta = 2.0 * (jnp.arange(W, dtype=jnp.float32) - cen_x) / W * PI
    phi = 2.0 * (jnp.arange(H, dtype=jnp.float32) - cen_y) / H * (PI / 2.0)
    theta = jnp.broadcast_to(theta[None, :], (H, W))
    phi = jnp.broadcast_to(phi[:, None], (H, W))
    x = jnp.cos(phi) * jnp.sin(theta)
    y = jnp.sin(phi)
    z = jnp.cos(phi) * jnp.cos(theta)
    return jnp.stack([x, y, z, jnp.ones_like(x)], axis=0).reshape(1, 4, H * W)


def _pick_tile_h(H_pad, W):
    """Rows per grid step.  H_pad is a multiple of 8.

    * tiny problems -> single block (zero per-step overhead);
    * otherwise: output block <= ~4 MiB (double-buffered in+out ~10.7 MiB,
      fits v7x's 64 MiB VMEM and v5e with an explicit vmem_limit_bytes);
    * prefer an even grid length >= 4 so v7x's 2 TensorCores get pipelined work.
    """
    out_bytes_per_row = 3 * 4 * W
    io_bytes_per_row = out_bytes_per_row + 4 * W
    if H_pad * io_bytes_per_row <= (2 << 20):         # whole in+out image <= 2 MiB
        return H_pad
    cap_rows = max(8, (4 << 20) // out_bytes_per_row)  # output block <= ~4 MiB
    divisors = [th for th in range(8, H_pad + 1, 8) if H_pad % th == 0]
    tiers = (
        lambda th: H_pad // th >= 4 and (H_pad // th) % 2 == 0,  # even grid >= 4
        lambda th: H_pad // th >= 4,
        lambda th: H_pad // th >= 2,
        lambda th: True,
    )
    for ok in tiers:
        cands = [th for th in divisors if th <= cap_rows and ok(th)]
        if cands:
            return max(cands)
    return 8


class EquiPtsManipulator:
    def __init__(self, H, W, C=64, tile_h=None):
        self.H, self.W, self.C = H, W, C
        self.N = H * W
        self.H_pad = ((H + 7) // 8) * 8
        self.tile_h = tile_h if tile_h is not None else _pick_tile_h(self.H_pad, W)
        assert self.H_pad % self.tile_h == 0

        # 1-D trig strips computed once here (keeps the full-tile sin/cos off the
        # kernel's single EUP slot).  Total size ~2*(H+W)*4 bytes.
        cen_x = (W - 1) / 2.0
        cen_y = (H - 1) / 2.0
        theta = (jnp.arange(W, dtype=jnp.float32) - cen_x) * (2.0 * PI / W)
        phi = (jnp.arange(H, dtype=jnp.float32) - cen_y) * (PI / H)
        self.sin_theta = jnp.sin(theta)[None, :]                       # (1, W)
        self.cos_theta = jnp.cos(theta)[None, :]                       # (1, W)
        sp = jnp.sin(phi)[:, None]
        cp = jnp.cos(phi)[:, None]
        if self.H_pad != H:
            pad = ((0, self.H_pad - H), (0, 0))
            sp = jnp.pad(sp, pad)
            cp = jnp.pad(cp, pad)
        self.sin_phi = sp                                              # (H_pad, 1)
        self.cos_phi = cp                                              # (H_pad, 1)

        # Double-buffered (in + out) blocks + strips + headroom; floor 16 MiB,
        # cap 48 MiB (under v7x's 64 MiB physical VMEM).
        step_bytes = 4 * self.tile_h * W * 4 + 8 * (self.tile_h + W) + 64
        self.vmem_limit_bytes = int(min(48 << 20,
                                        max(16 << 20, 2 * step_bytes + (2 << 20))))

    def project_pts(self, pts3D, K, K_inv, RT_cam1, RTinv_cam1, RT_cam2, RTinv_cam2):
        H, W, H_pad, TH = self.H, self.W, self.H_pad, self.tile_h
        # Compose the tiny camera chain once in the wrapper (3 4x4 matmuls).
        M = jnp.matmul(K, jnp.matmul(jnp.matmul(RT_cam2, RTinv_cam1), K_inv))
        M = M.reshape(4, 4).astype(jnp.float32)
        depth = pts3D.reshape(H, W).astype(jnp.float32)
        if H_pad != H:
            depth = jnp.pad(depth, ((0, H_pad - H), (0, 0)))

        sampler_hw = pl.pallas_call(
            project_pts_kernel,
            out_shape=jax.ShapeDtypeStruct((3, H_pad, W), jnp.float32),
            grid_spec=pl.GridSpec(
                grid=(H_pad // TH,),
                in_specs=[
                    pl.BlockSpec(memory_space=pltpu.MemorySpace.SMEM),  # composed 4x4
                    pl.BlockSpec((1, W), lambda i: (0, 0)),             # sin(theta)
                    pl.BlockSpec((1, W), lambda i: (0, 0)),             # cos(theta)
                    pl.BlockSpec((TH, 1), lambda i: (i, 0)),            # sin(phi)
                    pl.BlockSpec((TH, 1), lambda i: (i, 0)),            # cos(phi)
                    pl.BlockSpec((TH, W), lambda i: (i, 0)),            # depth
                ],
                out_specs=pl.BlockSpec((3, TH, W), lambda i: (0, i, 0)),
            ),
            compiler_params=pltpu.CompilerParams(
                dimension_semantics=("parallel",),
                vmem_limit_bytes=self.vmem_limit_bytes),
        )(M, self.sin_theta, self.cos_theta, self.sin_phi, self.cos_phi, depth)

        if H_pad != H:
            sampler_hw = sampler_hw[:, :H, :]
        return sampler_hw.reshape(1, 3, H * W)                          # (1, 3, N)

    def forward(self, alphas, src, pred_pts, K, K_inv,
                RT_cam1, RTinv_cam1, RT_cam2, RTinv_cam2):
        bs, c, h, w = src.shape
        if pred_pts.ndim > 3:
            pred_pts = pred_pts.reshape(bs, 1, -1)
            src = src.reshape(bs, c, -1)
            alphas = jnp.transpose(alphas.reshape(bs, 1, -1), (0, 2, 1))
        sampler = self.project_pts(pred_pts, K, K_inv,
                                   RT_cam1, RTinv_cam1, RT_cam2, RTinv_cam2)
        # TODO(synk): RasterizePointsXYsBlending (pytorch3d z-buffer point splatting)
        # has no clean Pallas equivalent; return the channel-major (1, 3, N) sampler
        # plus alphas / features.  The (0, 2, 1) permute is deferred to that consumer
        # so the kernel's lane-dense output is not re-transposed through HBM here.
        return sampler, alphas, src


def _reference_project_pts(xyzs, pts3D, K, K_inv, RT_cam1, RTinv_cam1,
                           RT_cam2, RTinv_cam2):
    """Faithful pure-JAX port of the torch project_pts (for correctness check)."""
    projected = xyzs * pts3D
    projected = projected.at[:, 3, :].set(1.0)
    cam1 = jnp.matmul(K_inv, projected)
    RT = jnp.matmul(RT_cam2, RTinv_cam1)
    wrld = jnp.matmul(RT, cam1)
    xy = jnp.matmul(K, wrld)
    x0, x1, x2 = xy[:, 0, :], xy[:, 1, :], xy[:, 2, :]
    normXY = jnp.sqrt(x0 ** 2 + x2 ** 2)
    normXY = jnp.where(normXY < 1e-6, 1e-6, normXY)
    normXYZ = jnp.sqrt(x0 ** 2 + x1 ** 2 + x2 ** 2)
    mask = normXYZ < EPS
    normXYZ = jnp.where(mask, EPS, normXYZ)
    u = jnp.arcsin(x0 / normXY)
    v = jnp.arcsin(x1 / normXYZ)
    u = jnp.where((x2 < 0) & (u >= 0), PI - u, u)
    u = jnp.where((x2 < 0) & (u < 0), -(PI + u), u)
    u = u / PI
    v = v / (PI / 2.0)
    ch0 = jnp.where(mask, -10.0, u / -1.0 * 2.0)
    ch1 = jnp.where(mask, -10.0, v / -1.0)
    ch2 = jnp.where(mask, -10.0, normXYZ)
    sampler = jnp.stack([ch0, ch1, ch2], axis=1)                        # (1, 3, N)
    sampler = sampler * jnp.array([1.0, -1.0, 1.0], jnp.float32)[None, :, None]
    return sampler


def _run_case(H, W, C, key):
    k1, k2, k3, k4 = jax.random.split(key, 4)
    src = jax.random.normal(k1, (1, C, H, W), dtype=jnp.float32)
    pred_pts = jax.random.uniform(k2, (1, 1, H, W), dtype=jnp.float32,
                                  minval=0.5, maxval=4.0)
    alphas = jax.random.uniform(k3, (1, 1, H, W), dtype=jnp.float32)

    eye = jnp.eye(4, dtype=jnp.float32)[None]
    K = eye + 0.05 * jax.random.normal(k4, (1, 4, 4), dtype=jnp.float32)
    K_inv = jnp.linalg.inv(K)
    RT_cam1 = eye
    RTinv_cam1 = eye
    ang = 0.3
    RT_cam2 = jnp.array(
        [[[jnp.cos(ang), 0.0, jnp.sin(ang), 0.10],
          [0.0,          1.0, 0.0,         -0.05],
          [-jnp.sin(ang), 0.0, jnp.cos(ang), 0.20],
          [0.0,          0.0, 0.0,          1.0]]], dtype=jnp.float32)
    RTinv_cam2 = jnp.linalg.inv(RT_cam2)

    model = EquiPtsManipulator(H, W, C=C)
    sampler, a_out, s_out = model.forward(
        alphas, src, pred_pts, K, K_inv, RT_cam1, RTinv_cam1, RT_cam2, RTinv_cam2)
    jax.block_until_ready(sampler)

    N = H * W
    assert sampler.shape == (1, 3, N)
    assert a_out.shape == (1, N, 1)
    assert s_out.shape == (1, C, N)
    assert bool(jnp.all(jnp.isfinite(sampler)))

    # Check against a faithful pure-JAX port of the torch reference.
    ref_sampler = _reference_project_pts(
        make_xyzs(H, W), pred_pts.reshape(1, 1, -1),
        K, K_inv, RT_cam1, RTinv_cam1, RT_cam2, RTinv_cam2)
    max_err = float(jnp.max(jnp.abs(sampler - ref_sampler)))
    assert max_err < 5e-3, f"H={H} W={W}: max |err| = {max_err}"


if __name__ == "__main__":
    key = jax.random.PRNGKey(0)
    kA, kB = jax.random.split(key, 2)

    # Small case (single grid step path).
    _run_case(H=16, W=128, C=4, key=kA)
    # Non-multiple-of-8 height exercises the wrapper-side padding path.
    _run_case(H=12, W=128, C=4, key=kB)

    print("KERNEL_OK")
</pallas_src>

<mosaic_0001>
module attributes {stable_mosaic.version = 11 : i64} {
  func.func @project_pts_kernel(%arg0: i32, %arg1: memref<4x4xf32, #tpu.memory_space<smem>>, %arg2: memref<1x128xf32, #tpu.memory_space<vmem>>, %arg3: memref<1x128xf32, #tpu.memory_space<vmem>>, %arg4: memref<16x1xf32, #tpu.memory_space<vmem>>, %arg5: memref<16x1xf32, #tpu.memory_space<vmem>>, %arg6: memref<16x128xf32, #tpu.memory_space<vmem>>, %arg7: memref<3x16x128xf32, #tpu.memory_space<vmem>>) attributes {dimension_semantics = [#tpu.dimension_semantics<parallel>], iteration_bounds = array<i64: 1>, scalar_prefetch = 0 : i64, scratch_operands = 0 : i64, tpu.core_type = #tpu.core_type<tc>, window_params = [{transform_indices = @transform_0, window_bounds = array<i64: 4, 4>}, {pipeline_mode = #tpu.pipeline_mode<synchronous>, transform_indices = @transform_1, window_bounds = array<i64: 1, 128>}, {pipeline_mode = #tpu.pipeline_mode<synchronous>, transform_indices = @transform_2, window_bounds = array<i64: 1, 128>}, {transform_indices = @transform_3, window_bounds = array<i64: 16, 1>}, {transform_indices = @transform_4, window_bounds = array<i64: 16, 1>}, {transform_indices = @transform_5, window_bounds = array<i64: 16, 128>}, {transform_indices = @transform_6, window_bounds = array<i64: 3, 16, 128>}]} {
    %c0 = arith.constant 0 : index
    %c0_0 = arith.constant 0 : index
    %0 = vector.load %arg6[%c0, %c0_0] : memref<16x128xf32, #tpu.memory_space<vmem>>, vector<16x128xf32>
    %c0_1 = arith.constant 0 : index
    %c0_2 = arith.constant 0 : index
    %1 = vector.load %arg2[%c0_1, %c0_2] : memref<1x128xf32, #tpu.memory_space<vmem>>, vector<1x128xf32>
    %c0_3 = arith.constant 0 : index
    %c0_4 = arith.constant 0 : index
    %2 = vector.load %arg3[%c0_3, %c0_4] : memref<1x128xf32, #tpu.memory_space<vmem>>, vector<1x128xf32>
    %c0_5 = arith.constant 0 : index
    %c0_6 = arith.constant 0 : index
    %3 = vector.load %arg4[%c0_5, %c0_6] : memref<16x1xf32, #tpu.memory_space<vmem>>, vector<16x1xf32>
    %c0_7 = arith.constant 0 : index
    %c0_8 = arith.constant 0 : index
    %4 = vector.load %arg5[%c0_7, %c0_8] : memref<16x1xf32, #tpu.memory_space<vmem>>, vector<16x1xf32>
    %5 = vector.broadcast %4 : vector<16x1xf32> to vector<16x128xf32>
    %6 = vector.broadcast %1 : vector<1x128xf32> to vector<16x128xf32>
    %7 = arith.mulf %5, %6 : vector<16x128xf32>
    %8 = arith.mulf %7, %0 : vector<16x128xf32>
    %9 = vector.broadcast %3 : vector<16x1xf32> to vector<16x128xf32>
    %10 = arith.mulf %9, %0 : vector<16x128xf32>
    %11 = vector.broadcast %4 : vector<16x1xf32> to vector<16x128xf32>
    %12 = vector.broadcast %2 : vector<1x128xf32> to vector<16x128xf32>
    %13 = arith.mulf %11, %12 : vector<16x128xf32>
    %14 = arith.mulf %13, %0 : vector<16x128xf32>
    %c0_9 = arith.constant 0 : index
    %c0_10 = arith.constant 0 : index
    %15 = memref.load %arg1[%c0_9, %c0_10] : memref<4x4xf32, #tpu.memory_space<smem>>
    %16 = vector.broadcast %15 : f32 to vector<16x128xf32>
    %17 = arith.mulf %16, %8 : vector<16x128xf32>
    %c0_11 = arith.constant 0 : index
    %c1 = arith.constant 1 : index
    %18 = memref.load %arg1[%c0_11, %c1] : memref<4x4xf32, #tpu.memory_space<smem>>
    %19 = vector.broadcast %18 : f32 to vector<16x128xf32>
    %20 = arith.mulf %19, %10 : vector<16x128xf32>
    %21 = arith.addf %17, %20 : vector<16x128xf32>
    %c0_12 = arith.constant 0 : index
    %c2 = arith.constant 2 : index
    %22 = memref.load %arg1[%c0_12, %c2] : memref<4x4xf32, #tpu.memory_space<smem>>
    %23 = vector.broadcast %22 : f32 to vector<16x128xf32>
    %24 = arith.mulf %23, %14 : vector<16x128xf32>
    %25 = arith.addf %21, %24 : vector<16x128xf32>
    %c0_13 = arith.constant 0 : index
    %c3 = arith.constant 3 : index
    %26 = memref.load %arg1[%c0_13, %c3] : memref<4x4xf32, #tpu.memory_space<smem>>
    %27 = vector.broadcast %26 : f32 to vector<16x128xf32>
    %28 = arith.addf %25, %27 : vector<16x128xf32>
    %c1_14 = arith.constant 1 : index
    %c0_15 = arith.constant 0 : index
    %29 = memref.load %arg1[%c1_14, %c0_15] : memref<4x4xf32, #tpu.memory_space<smem>>
    %30 = vector.broadcast %29 : f32 to vector<16x128xf32>
    %31 = arith.mulf %30, %8 : vector<16x128xf32>
    %c1_16 = arith.constant 1 : index
    %c1_17 = arith.constant 1 : index
    %32 = memref.load %arg1[%c1_16, %c1_17] : memref<4x4xf32, #tpu.memory_space<smem>>
    %33 = vector.broadcast %32 : f32 to vector<16x128xf32>
    %34 = arith.mulf %33, %10 : vector<16x128xf32>
    %35 = arith.addf %31, %34 : vector<16x128xf32>
    %c1_18 = arith.constant 1 : index
    %c2_19 = arith.constant 2 : index
    %36 = memref.load %arg1[%c1_18, %c2_19] : memref<4x4xf32, #tpu.memory_space<smem>>
    %37 = vector.broadcast %36 : f32 to vector<16x128xf32>
    %38 = arith.mulf %37, %14 : vector<16x128xf32>
    %39 = arith.addf %35, %38 : vector<16x128xf32>
    %c1_20 = arith.constant 1 : index
    %c3_21 = arith.constant 3 : index
    %40 = memref.load %arg1[%c1_20, %c3_21] : memref<4x4xf32, #tpu.memory_space<smem>>
    %41 = vector.broadcast %40 : f32 to vector<16x128xf32>
    %42 = arith.addf %39, %41 : vector<16x128xf32>
    %c2_22 = arith.constant 2 : index
    %c0_23 = arith.constant 0 : index
    %43 = memref.load %arg1[%c2_22, %c0_23] : memref<4x4xf32, #tpu.memory_space<smem>>
    %44 = vector.broadcast %43 : f32 to vector<16x128xf32>
    %45 = arith.mulf %44, %8 : vector<16x128xf32>
    %c2_24 = arith.constant 2 : index
    %c1_25 = arith.constant 1 : index
    %46 = memref.load %arg1[%c2_24, %c1_25] : memref<4x4xf32, #tpu.memory_space<smem>>
    %47 = vector.broadcast %46 : f32 to vector<16x128xf32>
    %48 = arith.mulf %47, %10 : vector<16x128xf32>
    %49 = arith.addf %45, %48 : vector<16x128xf32>
    %c2_26 = arith.constant 2 : index
    %c2_27 = arith.constant 2 : index
    %50 = memref.load %arg1[%c2_26, %c2_27] : memref<4x4xf32, #tpu.memory_space<smem>>
    %51 = vector.broadcast %50 : f32 to vector<16x128xf32>
    %52 = arith.mulf %51, %14 : vector<16x128xf32>
    %53 = arith.addf %49, %52 : vector<16x128xf32>
    %c2_28 = arith.constant 2 : index
    %c3_29 = arith.constant 3 : index
    %54 = memref.load %arg1[%c2_28, %c3_29] : memref<4x4xf32, #tpu.memory_space<smem>>
    %55 = vector.broadcast %54 : f32 to vector<16x128xf32>
    %56 = arith.addf %53, %55 : vector<16x128xf32>
    %57 = arith.mulf %28, %28 : vector<16x128xf32>
    %58 = arith.mulf %56, %56 : vector<16x128xf32>
    %59 = arith.addf %57, %58 : vector<16x128xf32>
    %60 = math.sqrt %59 : vector<16x128xf32>
    %61 = arith.mulf %42, %42 : vector<16x128xf32>
    %62 = arith.addf %59, %61 : vector<16x128xf32>
    %63 = math.sqrt %62 : vector<16x128xf32>
    %cst = arith.constant 0.00999999977 : f32
    %64 = vector.broadcast %cst : f32 to vector<16x128xf32>
    %65 = arith.cmpf olt, %63, %64 : vector<16x128xf32>
    %66 = math.atan2 %28, %56 : vector<16x128xf32>
    %67 = math.atan2 %42, %60 : vector<16x128xf32>
    %cst_30 = arith.constant -0.636619746 : f32
    %68 = vector.broadcast %cst_30 : f32 to vector<16x128xf32>
    %69 = arith.mulf %66, %68 : vector<16x128xf32>
    %cst_31 = arith.constant -1.000000e+01 : f32
    %70 = vector.broadcast %cst_31 : f32 to vector<16x128xf32>
    %71 = arith.select %65, %70, %69 : vector<16x128xi1>, vector<16x128xf32>
    %c0_32 = arith.constant 0 : index
    %c0_33 = arith.constant 0 : index
    %c0_34 = arith.constant 0 : index
    %72 = vector.load %arg7[%c0_32, %c0_33, %c0_34] : memref<3x16x128xf32, #tpu.memory_space<vmem>>, vector<1x16x128xf32>
    %73 = vector.shape_cast %72 : vector<1x16x128xf32> to vector<16x128xf32>
    %74 = vector.shape_cast %71 : vector<16x128xf32> to vector<1x16x128xf32>
    tpu.vector_store %arg7[%c0_32, %c0_33, %c0_34], %74 {strides = array<i32>} : memref<3x16x128xf32, #tpu.memory_space<vmem>>, vector<1x16x128xf32>,
    %cst_35 = arith.constant 0.636619746 : f32
    %75 = vector.broadcast %cst_35 : f32 to vector<16x128xf32>
    %76 = arith.mulf %67, %75 : vector<16x128xf32>
    %cst_36 = arith.constant 1.000000e+01 : f32
    %77 = vector.broadcast %cst_36 : f32 to vector<16x128xf32>
    %78 = arith.select %65, %77, %76 : vector<16x128xi1>, vector<16x128xf32>
    %c1_37 = arith.constant 1 : index
    %c0_38 = arith.constant 0 : index
    %c0_39 = arith.constant 0 : index
    %79 = vector.load %arg7[%c1_37, %c0_38, %c0_39] : memref<3x16x128xf32, #tpu.memory_space<vmem>>, vector<1x16x128xf32>
    %80 = vector.shape_cast %79 : vector<1x16x128xf32> to vector<16x128xf32>
    %81 = vector.shape_cast %78 : vector<16x128xf32> to vector<1x16x128xf32>
    tpu.vector_store %arg7[%c1_37, %c0_38, %c0_39], %81 {strides = array<i32>} : memref<3x16x128xf32, #tpu.memory_space<vmem>>, vector<1x16x128xf32>,
    %cst_40 = arith.constant -1.000000e+01 : f32
    %82 = vector.broadcast %cst_40 : f32 to vector<16x128xf32>
    %83 = arith.select %65, %82, %63 : vector<16x128xi1>, vector<16x128xf32>
    %c2_41 = arith.constant 2 : index
    %c0_42 = arith.constant 0 : index
    %c0_43 = arith.constant 0 : index
    %84 = vector.load %arg7[%c2_41, %c0_42, %c0_43] : memref<3x16x128xf32, #tpu.memory_space<vmem>>, vector<1x16x128xf32>
    %85 = vector.shape_cast %84 : vector<1x16x128xf32> to vector<16x128xf32>
    %86 = vector.shape_cast %83 : vector<16x128xf32> to vector<1x16x128xf32>
    tpu.vector_store %arg7[%c2_41, %c0_42, %c0_43], %86 {strides = array<i32>} : memref<3x16x128xf32, #tpu.memory_space<vmem>>, vector<1x16x128xf32>,
    return
  }
  func.func @transform_0(%arg0: i32) -> (i32, i32) {
    %c0_i32 = arith.constant 0 : i32
    %c0_i32_0 = arith.constant 0 : i32
    %c0_i32_1 = arith.constant 0 : i32
    return %c0_i32, %c0_i32_0 : i32, i32
  }
  func.func @transform_1(%arg0: i32) -> (i32, i32) {
    %c0_i32 = arith.constant 0 : i32
    %c0_i32_0 = arith.constant 0 : i32
    %c0_i32_1 = arith.constant 0 : i32
    return %c0_i32, %c0_i32_0 : i32, i32
  }
  func.func @transform_2(%arg0: i32) -> (i32, i32) {
    %c0_i32 = arith.constant 0 : i32
    %c0_i32_0 = arith.constant 0 : i32
    %c0_i32_1 = arith.constant 0 : i32
    return %c0_i32, %c0_i32_0 : i32, i32
  }
  func.func @transform_3(%arg0: i32) -> (i32, i32) {
    %c0_i32 = arith.constant 0 : i32
    %c0_i32_0 = arith.constant 0 : i32
    return %arg0, %c0_i32 : i32, i32
  }
  func.func @transform_4(%arg0: i32) -> (i32, i32) {
    %c0_i32 = arith.constant 0 : i32
    %c0_i32_0 = arith.constant 0 : i32
    return %arg0, %c0_i32 : i32, i32
  }
  func.func @transform_5(%arg0: i32) -> (i32, i32) {
    %c0_i32 = arith.constant 0 : i32
    %c0_i32_0 = arith.constant 0 : i32
    return %arg0, %c0_i32 : i32, i32
  }
  func.func @transform_6(%arg0: i32) -> (i32, i32, i32) {
    %c0_i32 = arith.constant 0 : i32
    %c0_i32_0 = arith.constant 0 : i32
    %c0_i32_1 = arith.constant 0 : i32
    return %c0_i32, %arg0, %c0_i32_0 : i32, i32, i32
  }
}

</mosaic_0001>

<llo_original>
// kernel: tpu_custom_call.1
$region0: #{tpu_custom_call.1}
  #allocation0 [shape = 'u32[]', space=smem, size = 0x4, offset = 0x4, fixed_abs, tag = 'smem constant byte address 0x4 - core index']
  #allocation1 [shape = 'u32[72,128]{1,0:T(1,128)}', space=vmem, size = 0x9000, scoped, tag = 'internal scratch']
  %s0 = inlined_call_operand.vmem [shape: f32[4,4], index: 0, kind: input, shape index: {}]
  %s1 = inlined_call_operand.vmem [shape: f32[1,128], index: 1, kind: input, shape index: {}]
  %s2 = inlined_call_operand.vmem [shape: f32[1,128], index: 2, kind: input, shape index: {}]
  %s3 = inlined_call_operand.vmem [shape: f32[16,1], index: 3, kind: input, shape index: {}]
  %s4 = inlined_call_operand.vmem [shape: f32[16,1], index: 4, kind: input, shape index: {}]
  %s5 = inlined_call_operand.vmem [shape: f32[16,128], index: 5, kind: input, shape index: {}]
  %s6 = inlined_call_operand.hbm [shape: f32[3,16,128], index: 6, kind: output, shape index: {}]
  %s7 = sld [smem:[#allocation0]]
  $region38: #{tpu_custom_call.1} parent=0
    _
  %s9 = ssub.s32 1, %s7
  %s10 = scalar_select 0, %s9, %s7
  $region1: #{tpu_custom_call.1} parent=0
    #allocation2 [shape = 'u8[2048]{0}', space=smem, size = 0x800, scoped, tag = 'input window, operand 0, single buffered']
    #allocation3 [shape = 's32[1]{0}', space=sflag, size = 0x4, scoped, tag = 'scoped memory for tpu_custom_call.1']
    #allocation4 [shape = 's32[1]{0}', space=sflag, size = 0x4, scoped, tag = 'scoped memory for tpu_custom_call.1']
    #allocation5 [shape = 'u8[24576]{0}', space=vmem, size = 0x6000, scoped, tag = 'output window, operand 0, single buffered']
    %11 = vsyncpa [#allocation4], 0
    %12 = vsyncpa [#allocation3], 0
    // Predicated region
    $region2: #{tpu_custom_call.1} parent=1 // pred_check
      _
    $region3: #{tpu_custom_call.1} parent=1 // pred_check_branch
      %14 = sbr.rel (0) target = $region5
    $region4: #{tpu_custom_call.1} parent=1 // pred_region
      %16 = vsyncadd [#allocation4], 0
      %s18 = sshll.u32 %s0, 4
      %s19 = int_to_ptr.vmem [resolvable:$true] %s18
      %21 = dma.vmem_to_smem %s19, 64, [#allocation2], [#allocation4]
    $region5: #{tpu_custom_call.1} parent=1 // pred_fallthru
      _
    // Predicated region
    $region6: #{tpu_custom_call.1} parent=1 // pred_check
      _
    $region7: #{tpu_custom_call.1} parent=1 // pred_check_branch
      %23 = sbr.rel (0) target = $region9
    $region8: #{tpu_custom_call.1} parent=1 // pred_region
      _
    $region9: #{tpu_custom_call.1} parent=1 // pred_fallthru
      _
    // Predicated region
    $region10: #{tpu_custom_call.1} parent=1 // pred_check
      _
    $region11: #{tpu_custom_call.1} parent=1 // pred_check_branch
      %25 = sbr.rel (0) target = $region13
    $region12: #{tpu_custom_call.1} parent=1 // pred_region
      _
    $region13: #{tpu_custom_call.1} parent=1 // pred_fallthru
      _
    // Predicated region
    $region14: #{tpu_custom_call.1} parent=1 // pred_check
      _
    $region15: #{tpu_custom_call.1} parent=1 // pred_check_branch
      %27 = sbr.rel (0) target = $region17
    $region16: #{tpu_custom_call.1} parent=1 // pred_region
      _
    $region17: #{tpu_custom_call.1} parent=1 // pred_fallthru
      _
    // Predicated region
    $region18: #{tpu_custom_call.1} parent=1 // pred_check
      _
    $region19: #{tpu_custom_call.1} parent=1 // pred_check_branch
      %29 = sbr.rel (0) target = $region21
    $region20: #{tpu_custom_call.1} parent=1 // pred_region
      _
    $region21: #{tpu_custom_call.1} parent=1 // pred_fallthru
      _
    // Predicated region
    $region22: #{tpu_custom_call.1} parent=1 // pred_check
      _
    $region23: #{tpu_custom_call.1} parent=1 // pred_check_branch
      %31 = sbr.rel (0) target = $region25
    $region24: #{tpu_custom_call.1} parent=1 // pred_region
      _
    $region25: #{tpu_custom_call.1} parent=1 // pred_fallthru
      _
    // Predicated region
    $region26: #{tpu_custom_call.1} parent=1 // pred_check
      _
    $region27: #{tpu_custom_call.1} parent=1 // pred_check_branch
      %33 = sbr.rel (0) target = $region29
    $region28: #{tpu_custom_call.1} parent=1 // pred_region
      %35 = dma.done [#allocation4], 64
    $region29: #{tpu_custom_call.1} parent=1 // pred_fallthru
      _
    %36 = sfence
    %v37 = vld [vmem:[%s5] sm:$0xff]
    %v38 = vld [vmem:[%s5 + $0x8] sm:$0xff]
    %v39 = vld [vmem:[%s1] sm:$0x1]
    %v40 = vld [vmem:[%s2] sm:$0x1]
    %v41 = vld [vmem:[%s3] sm:$0xff]
    %v42 = vld [vmem:[%s3 + $0x8] sm:$0xff]
    %v43 = vld [vmem:[%s4] sm:$0xff]
    %v44 = vld [vmem:[%s4 + $0x8] sm:$0xff]
    %46 = vset.pattern.permute.xlu0 0
    %47 = vperm.xlu0 %46, %v43
    %v48 = vpop.permute.xlu0 %47
    %51 = vset.pattern.permute.xlu0 0
    %52 = vperm.xlu0 %51, %v44
    %v53 = vpop.permute.xlu0 %52
    %v56 = vperm.slane %v39, 0
    %v58 = vmul.f32 %v48, %v56
    %v59 = vmul.f32 %v53, %v56
    %v60 = vmul.f32 %v58, %v37
    %v61 = vmul.f32 %v59, %v38
    %63 = vset.pattern.permute.xlu0 0
    %64 = vperm.xlu0 %63, %v41
    %v65 = vpop.permute.xlu0 %64
    %68 = vset.pattern.permute.xlu0 0
    %69 = vperm.xlu0 %68, %v42
    %v70 = vpop.permute.xlu0 %69
    %v72 = vmul.f32 %v65, %v37
    %v73 = vmul.f32 %v70, %v38
    %v75 = vperm.slane %v40, 0
    %v77 = vmul.f32 %v48, %v75
    %v78 = vmul.f32 %v53, %v75
    %v79 = vmul.f32 %v77, %v37
    %v80 = vmul.f32 %v78, %v38
    %s81 = sld [smem:[#allocation2]]
    %v82 = vstv %s81
    %v83 = vmul.f32 %v82, %v60
    %v84 = vmul.f32 %v82, %v61
    %s85 = sld [smem:[#allocation2 + $0x1]]
    %v86 = vstv %s85
    %v87 = vmul.f32 %v86, %v72
    %v88 = vmul.f32 %v86, %v73
    %v89 = vadd.f32 %v83, %v87
    %v90 = vadd.f32 %v84, %v88
    %s91 = sld [smem:[#allocation2 + $0x2]]
    %v92 = vstv %s91
    %v93 = vmul.f32 %v92, %v79
    %v94 = vmul.f32 %v92, %v80
    %v95 = vadd.f32 %v89, %v93
    %v96 = vadd.f32 %v90, %v94
    %s97 = sld [smem:[#allocation2 + $0x3]]
    %v98 = vstv %s97
    %v99 = vadd.f32 %v95, %v98
    %v100 = vadd.f32 %v96, %v98
    %s101 = sld [smem:[#allocation2 + $0x80]]
    %v102 = vstv %s101
    %v103 = vmul.f32 %v102, %v60
    %v104 = vmul.f32 %v102, %v61
    %s105 = sld [smem:[#allocation2 + $0x81]]
    %v106 = vstv %s105
    %v107 = vmul.f32 %v106, %v72
    %v108 = vmul.f32 %v106, %v73
    %v109 = vadd.f32 %v103, %v107
    %v110 = vadd.f32 %v104, %v108
    %s111 = sld [smem:[#allocation2 + $0x82]]
    %v112 = vstv %s111
    %v113 = vmul.f32 %v112, %v79
    %v114 = vmul.f32 %v112, %v80
    %v115 = vadd.f32 %v109, %v113
    %v116 = vadd.f32 %v110, %v114
    %s117 = sld [smem:[#allocation2 + $0x83]]
    %v118 = vstv %s117
    %v119 = vadd.f32 %v115, %v118
    %v120 = vadd.f32 %v116, %v118
    %s121 = sld [smem:[#allocation2 + $0x100]]
    %v122 = vstv %s121
    %v123 = vmul.f32 %v122, %v60
    %v124 = vmul.f32 %v122, %v61
    %s125 = sld [smem:[#allocation2 + $0x101]]
    %v126 = vstv %s125
    %v127 = vmul.f32 %v126, %v72
    %v128 = vmul.f32 %v126, %v73
    %v129 = vadd.f32 %v123, %v127
    %v130 = vadd.f32 %v124, %v128
    %s131 = sld [smem:[#allocation2 + $0x102]]
    %v132 = vstv %s131
    %v133 = vmul.f32 %v132, %v79
    %v134 = vmul.f32 %v132, %v80
    %v135 = vadd.f32 %v129, %v133
    %v136 = vadd.f32 %v130, %v134
    %s137 = sld [smem:[#allocation2 + $0x103]]
    %v138 = vstv %s137
    %v139 = vadd.f32 %v135, %v138
    %v140 = vadd.f32 %v136, %v138
    %v141 = vmul.f32 %v99, %v99
    %v142 = vmul.f32 %v100, %v100
    %v143 = vmul.f32 %v139, %v139
    %v144 = vmul.f32 %v140, %v140
    %v145 = vadd.f32 %v141, %v143
    %v146 = vadd.f32 %v142, %v144
    %v147 = vrsqrt.pop %v145
    %v148 = vmul.f32 %v147, %v145
    %v149 = vmul.f32 %v148, %v147
    %v150 = vmul.f32 0.5, %v149
    %v151 = vsub.f32 1.5, %v150
    %v152 = vmul.f32 %v147, %v151
    %v153 = vmul.f32 %v145, %v152
    %vm154 = vcmp.eq.f32.partialorder %v145, inf
    %v155 = vsel %vm154, %v145, %v153
    %vm156 = vcmp.eq.f32.partialorder %v145, 0.0
    %v157 = vand.u32 %v145, 2147483648
    %v158 = vsel %vm156, %v157, %v155
    %v159 = vrsqrt.pop %v146
    %v160 = vmul.f32 %v159, %v146
    %v161 = vmul.f32 %v160, %v159
    %v162 = vmul.f32 0.5, %v161
    %v163 = vsub.f32 1.5, %v162
    %v164 = vmul.f32 %v159, %v163
    %v165 = vmul.f32 %v146, %v164
    %vm166 = vcmp.eq.f32.partialorder %v146, inf
    %v167 = vsel %vm166, %v146, %v165
    %vm168 = vcmp.eq.f32.partialorder %v146, 0.0
    %v169 = vand.u32 %v146, 2147483648
    %v170 = vsel %vm168, %v169, %v167
    %v171 = vmul.f32 %v119, %v119
    %v172 = vmul.f32 %v120, %v120
    %v173 = vadd.f32 %v145, %v171
    %v174 = vadd.f32 %v146, %v172
    %v175 = vrsqrt.pop %v173
    %v176 = vmul.f32 %v175, %v173
    %v177 = vmul.f32 %v176, %v175
    %v178 = vmul.f32 0.5, %v177
    %v179 = vsub.f32 1.5, %v178
    %v180 = vmul.f32 %v175, %v179
    %v181 = vmul.f32 %v173, %v180
    %vm182 = vcmp.eq.f32.partialorder %v173, inf
    %v183 = vsel %vm182, %v173, %v181
    %vm184 = vcmp.eq.f32.partialorder %v173, 0.0
    %v185 = vand.u32 %v173, 2147483648
    %v186 = vsel %vm184, %v185, %v183
    %v187 = vrsqrt.pop %v174
    %v188 = vmul.f32 %v187, %v174
    %v189 = vmul.f32 %v188, %v187
    %v190 = vmul.f32 0.5, %v189
    %v191 = vsub.f32 1.5, %v190
    %v192 = vmul.f32 %v187, %v191
    %v193 = vmul.f32 %v174, %v192
    %vm194 = vcmp.eq.f32.partialorder %v174, inf
    %v195 = vsel %vm194, %v174, %v193
    %vm196 = vcmp.eq.f32.partialorder %v174, 0.0
    %v197 = vand.u32 %v174, 2147483648
    %v198 = vsel %vm196, %v197, %v195
    %vm199 = vcmp.lt.f32.partialorder %v186, 0.01
    %vm200 = vcmp.lt.f32.partialorder %v198, 0.01
    %v201 = vand.u32 2147483647, %v139
    %v202 = vand.u32 2147483647, %v99
    %v203 = vmin.f32 %v201, %v202
    %v204 = vmax.f32 %v201, %v202
    %v205 = vrcp.pop %v204
    %v206 = vmul.f32 %v204, %v205
    %v207 = vsub.f32 1.0, %v206
    %v208 = vmul.f32 %v205, %v207
    %v209 = vadd.f32 %v205, %v208
    %vm210 = vweird.f32 %v204
    %vm211 = vweird.f32 %v205
    %vm212 = vmor %vm210, %vm211
    %v213 = vsel %vm212, %v205, %v209
    %v214 = vand.u32 2147483647, %v204
    %vm215 = vcmp.eq.f32.partialorder %v214, 8.507059e+37
    %v216 = vand.u32 %v204, 2147483648
    %v217 = vor.u32 1.1754944e-38, %v216
    %v218 = vsel %vm215, %v217, %v213
    %v219 = vmul.f32 %v203, %v218
    %v220 = vmul.f32 %v219, %v219
    %v221 = vmul.f32 0.002785687, %v220
    %v222 = vadd.f32 %v221, -0.015866
    %v223 = vmul.f32 %v222, %v220
    %v224 = vadd.f32 %v223, 0.04247222
    %v225 = vmul.f32 %v224, %v220
    %v226 = vadd.f32 %v225, -0.074975304
    %v227 = vmul.f32 %v226, %v220
    %v228 = vadd.f32 %v227, 0.1064488
    %v229 = vmul.f32 %v228, %v220
    %v230 = vadd.f32 %v229, -0.14207031
    %v231 = vmul.f32 %v230, %v220
    %v232 = vadd.f32 %v231, 0.19993454
    %v233 = vmul.f32 %v232, %v220
    %v234 = vadd.f32 %v233, -0.33333147
    %v235 = vmul.f32 %v234, %v220
    %v236 = vmul.f32 %v235, %v219
    %v237 = vadd.f32 %v236, %v219
    %vm238 = vcmp.gt.f32.partialorder %v202, %v201
    %v239 = vsub.f32 1.5707964, %v237
    %v240 = vsel %vm238, %v239, %v237
    %vm241 = vcmp.lt.f32.partialorder %v139, 0.0
    %v242 = vsub.f32 3.1415927, %v240
    %v243 = vsel %vm241, %v242, %v240
    %vm244 = vcmp.lt.s32.totalorder %v139, 0
    %v245 = vsel %vm244, 3.1415927, 0.0
    %vm246 = vcmp.eq.f32.partialorder %v99, 0.0
    %v247 = vsel %vm246, %v245, %v243
    %vm248 = vcmp.ne.f32.partialorder %v139, %v139
    %vm249 = vcmp.ne.f32.partialorder %v99, %v99
    %vm250 = vmor %vm248, %vm249
    %v251 = vsel %vm250, nan, %v247
    %vm252 = vcmp.lt.f32.partialorder %v139, 0.0
    %v253 = vsel %vm252, 2.3561945, 0.7853982
    %vm254 = vcmp.eq.s32.totalorder %v201, inf
    %vm255 = vcmp.eq.s32.totalorder %v202, inf
    %vm256 = vmand %vm254, %vm255
    %v257 = vsel %vm256, %v253, %v251
    %v258 = vand.u32 2147483647, %v257
    %v259 = vand.u32 %v99, 2147483648
    %v260 = vor.u32 %v258, %v259
    %v261 = vand.u32 2147483647, %v140
    %v262 = vand.u32 2147483647, %v100
    %v263 = vmin.f32 %v261, %v262
    %v264 = vmax.f32 %v261, %v262
    %v265 = vrcp.pop %v264
    %v266 = vmul.f32 %v264, %v265
    %v267 = vsub.f32 1.0, %v266
    %v268 = vmul.f32 %v265, %v267
    %v269 = vadd.f32 %v265, %v268
    %vm270 = vweird.f32 %v264
    %vm271 = vweird.f32 %v265
    %vm272 = vmor %vm270, %vm271
    %v273 = vsel %vm272, %v265, %v269
    %v274 = vand.u32 2147483647, %v264
    %vm275 = vcmp.eq.f32.partialorder %v274, 8.507059e+37
    %v276 = vand.u32 %v264, 2147483648
    %v277 = vor.u32 1.1754944e-38, %v276
    %v278 = vsel %vm275, %v277, %v273
    %v279 = vmul.f32 %v263, %v278
    %v280 = vmul.f32 %v279, %v279
    %v281 = vmul.f32 0.002785687, %v280
    %v282 = vadd.f32 %v281, -0.015866
    %v283 = vmul.f32 %v282, %v280
    %v284 = vadd.f32 %v283, 0.04247222
    %v285 = vmul.f32 %v284, %v280
    %v286 = vadd.f32 %v285, -0.074975304
    %v287 = vmul.f32 %v286, %v280
    %v288 = vadd.f32 %v287, 0.1064488
    %v289 = vmul.f32 %v288, %v280
    %v290 = vadd.f32 %v289, -0.14207031
    %v291 = vmul.f32 %v290, %v280
    %v292 = vadd.f32 %v291, 0.19993454
    %v293 = vmul.f32 %v292, %v280
    %v294 = vadd.f32 %v293, -0.33333147
    %v295 = vmul.f32 %v294, %v280
    %v296 = vmul.f32 %v295, %v279
    %v297 = vadd.f32 %v296, %v279
    %vm298 = vcmp.gt.f32.partialorder %v262, %v261
    %v299 = vsub.f32 1.5707964, %v297
    %v300 = vsel %vm298, %v299, %v297
    %vm301 = vcmp.lt.f32.partialorder %v140, 0.0
    %v302 = vsub.f32 3.1415927, %v300
    %v303 = vsel %vm301, %v302, %v300
    %vm304 = vcmp.lt.s32.totalorder %v140, 0
    %v305 = vsel %vm304, 3.1415927, 0.0
    %vm306 = vcmp.eq.f32.partialorder %v100, 0.0
    %v307 = vsel %vm306, %v305, %v303
    %vm308 = vcmp.ne.f32.partialorder %v140, %v140
    %vm309 = vcmp.ne.f32.partialorder %v100, %v100
    %vm310 = vmor %vm308, %vm309
    %v311 = vsel %vm310, nan, %v307
    %vm312 = vcmp.lt.f32.partialorder %v140, 0.0
    %v313 = vsel %vm312, 2.3561945, 0.7853982
    %vm314 = vcmp.eq.s32.totalorder %v261, inf
    %vm315 = vcmp.eq.s32.totalorder %v262, inf
    %vm316 = vmand %vm314, %vm315
    %v317 = vsel %vm316, %v313, %v311
    %v318 = vand.u32 2147483647, %v317
    %v319 = vand.u32 %v100, 2147483648
    %v320 = vor.u32 %v318, %v319
    %v321 = vand.u32 2147483647, %v158
    %v322 = vand.u32 2147483647, %v119
    %v323 = vmin.f32 %v321, %v322
    %v324 = vmax.f32 %v321, %v322
    %v325 = vrcp.pop %v324
    %v326 = vmul.f32 %v324, %v325
    %v327 = vsub.f32 1.0, %v326
    %v328 = vmul.f32 %v325, %v327
    %v329 = vadd.f32 %v325, %v328
    %vm330 = vweird.f32 %v324
    %vm331 = vweird.f32 %v325
    %vm332 = vmor %vm330, %vm331
    %v333 = vsel %vm332, %v325, %v329
    %v334 = vand.u32 2147483647, %v324
    %vm335 = vcmp.eq.f32.partialorder %v334, 8.507059e+37
    %v336 = vand.u32 %v324, 2147483648
    %v337 = vor.u32 1.1754944e-38, %v336
    %v338 = vsel %vm335, %v337, %v333
    %v339 = vmul.f32 %v323, %v338
    %v340 = vmul.f32 %v339, %v339
    %v341 = vmul.f32 0.002785687, %v340
    %v342 = vadd.f32 %v341, -0.015866
    %v343 = vmul.f32 %v342, %v340
    %v344 = vadd.f32 %v343, 0.04247222
    %v345 = vmul.f32 %v344, %v340
    %v346 = vadd.f32 %v345, -0.074975304
    %v347 = vmul.f32 %v346, %v340
    %v348 = vadd.f32 %v347, 0.1064488
    %v349 = vmul.f32 %v348, %v340
    %v350 = vadd.f32 %v349, -0.14207031
    %v351 = vmul.f32 %v350, %v340
    %v352 = vadd.f32 %v351, 0.19993454
    %v353 = vmul.f32 %v352, %v340
    %v354 = vadd.f32 %v353, -0.33333147
    %v355 = vmul.f32 %v354, %v340
    %v356 = vmul.f32 %v355, %v339
    %v357 = vadd.f32 %v356, %v339
    %vm358 = vcmp.gt.f32.partialorder %v322, %v321
    %v359 = vsub.f32 1.5707964, %v357
    %v360 = vsel %vm358, %v359, %v357
    %vm361 = vcmp.lt.f32.partialorder %v158, 0.0
    %v362 = vsub.f32 3.1415927, %v360
    %v363 = vsel %vm361, %v362, %v360
    %vm364 = vcmp.lt.s32.totalorder %v158, 0
    %v365 = vsel %vm364, 3.1415927, 0.0
    %vm366 = vcmp.eq.f32.partialorder %v119, 0.0
    %v367 = vsel %vm366, %v365, %v363
    %vm368 = vcmp.ne.f32.partialorder %v158, %v158
    %vm369 = vcmp.ne.f32.partialorder %v119, %v119
    %vm370 = vmor %vm368, %vm369
    %v371 = vsel %vm370, nan, %v367
    %vm372 = vcmp.lt.f32.partialorder %v158, 0.0
    %v373 = vsel %vm372, 2.3561945, 0.7853982
    %vm374 = vcmp.eq.s32.totalorder %v321, inf
    %vm375 = vcmp.eq.s32.totalorder %v322, inf
    %vm376 = vmand %vm374, %vm375
    %v377 = vsel %vm376, %v373, %v371
    %v378 = vand.u32 2147483647, %v377
    %v379 = vand.u32 %v119, 2147483648
    %v380 = vor.u32 %v378, %v379
    %v381 = vand.u32 2147483647, %v170
    %v382 = vand.u32 2147483647, %v120
    %v383 = vmin.f32 %v381, %v382
    %v384 = vmax.f32 %v381, %v382
    %v385 = vrcp.pop %v384
    %v386 = vmul.f32 %v384, %v385
    %v387 = vsub.f32 1.0, %v386
    %v388 = vmul.f32 %v385, %v387
    %v389 = vadd.f32 %v385, %v388
    %vm390 = vweird.f32 %v384
    %vm391 = vweird.f32 %v385
    %vm392 = vmor %vm390, %vm391
    %v393 = vsel %vm392, %v385, %v389
    %v394 = vand.u32 2147483647, %v384
    %vm395 = vcmp.eq.f32.partialorder %v394, 8.507059e+37
    %v396 = vand.u32 %v384, 2147483648
    %v397 = vor.u32 1.1754944e-38, %v396
    %v398 = vsel %vm395, %v397, %v393
    %v399 = vmul.f32 %v383, %v398
    %v400 = vmul.f32 %v399, %v399
    %v401 = vmul.f32 0.002785687, %v400
    %v402 = vadd.f32 %v401, -0.015866
    %v403 = vmul.f32 %v402, %v400
    %v404 = vadd.f32 %v403, 0.04247222
    %v405 = vmul.f32 %v404, %v400
    %v406 = vadd.f32 %v405, -0.074975304
    %v407 = vmul.f32 %v406, %v400
    %v408 = vadd.f32 %v407, 0.1064488
    %v409 = vmul.f32 %v408, %v400
    %v410 = vadd.f32 %v409, -0.14207031
    %v411 = vmul.f32 %v410, %v400
    %v412 = vadd.f32 %v411, 0.19993454
    %v413 = vmul.f32 %v412, %v400
    %v414 = vadd.f32 %v413, -0.33333147
    %v415 = vmul.f32 %v414, %v400
    %v416 = vmul.f32 %v415, %v399
    %v417 = vadd.f32 %v416, %v399
    %vm418 = vcmp.gt.f32.partialorder %v382, %v381
    %v419 = vsub.f32 1.5707964, %v417
    %v420 = vsel %vm418, %v419, %v417
    %vm421 = vcmp.lt.f32.partialorder %v170, 0.0
    %v422 = vsub.f32 3.1415927, %v420
    %v423 = vsel %vm421, %v422, %v420
    %vm424 = vcmp.lt.s32.totalorder %v170, 0
    %v425 = vsel %vm424, 3.1415927, 0.0
    %vm426 = vcmp.eq.f32.partialorder %v120, 0.0
    %v427 = vsel %vm426, %v425, %v423
    %vm428 = vcmp.ne.f32.partialorder %v170, %v170
    %vm429 = vcmp.ne.f32.partialorder %v120, %v120
    %vm430 = vmor %vm428, %vm429
    %v431 = vsel %vm430, nan, %v427
    %vm432 = vcmp.lt.f32.partialorder %v170, 0.0
    %v433 = vsel %vm432, 2.3561945, 0.7853982
    %vm434 = vcmp.eq.s32.totalorder %v381, inf
    %vm435 = vcmp.eq.s32.totalorder %v382, inf
    %vm436 = vmand %vm434, %vm435
    %v437 = vsel %vm436, %v433, %v431
    %v438 = vand.u32 2147483647, %v437
    %v439 = vand.u32 %v120, 2147483648
    %v440 = vor.u32 %v438, %v439
    %v441 = vmul.f32 %v260, -0.63661975
    %v442 = vmul.f32 %v320, -0.63661975
    %v443 = vsel %vm199, -10.0, %v441
    %v444 = vsel %vm200, -10.0, %v442
    %445 = vst [vmem:[#allocation5] sm:$0xff] %v443
    %446 = vst [vmem:[#allocation5 + $0x8] sm:$0xff] %v444
    %v447 = vmul.f32 %v380, 0.63661975
    %v448 = vmul.f32 %v440, 0.63661975
    %v449 = vsel %vm199, 10.0, %v447
    %v450 = vsel %vm200, 10.0, %v448
    %s451 = scalar_lea.vmem [#allocation5], 16
    %452 = vst [vmem:[%s451] sm:$0xff] %v449
    %453 = vst [vmem:[%s451 + $0x8] sm:$0xff] %v450
    %v454 = vsel %vm199, -10.0, %v186
    %v455 = vsel %vm200, -10.0, %v198
    %s456 = scalar_lea.vmem [#allocation5], 32
    %457 = vst [vmem:[%s456] sm:$0xff] %v454
    %458 = vst [vmem:[%s456 + $0x8] sm:$0xff] %v455
    // Predicated region
    $region30: #{tpu_custom_call.1} parent=1 // pred_check
      _
    $region31: #{tpu_custom_call.1} parent=1 // pred_check_branch
      %460 = sbr.rel (0) target = $region33
    $region32: #{tpu_custom_call.1} parent=1 // pred_region
      %462 = vsyncadd [#allocation3], 0
      %s463 = sshll.u32 [#allocation5], 4
      %s464 = int_to_ptr.vmem [resolvable:$true] %s463
      %s465 = sshll.u32 %s6, 4
      %s466 = int_to_ptr.hbm [resolvable:$true] %s465
      %471 = dma.vmem_to_hbm [thread:$0]  %s464, 768, %s466, [#allocation3], 128, 128, 8
    $region33: #{tpu_custom_call.1} parent=1 // pred_fallthru
      _
    // Predicated region
    $region34: #{tpu_custom_call.1} parent=1 // pred_check
      _
    $region35: #{tpu_custom_call.1} parent=1 // pred_check_branch
      %473 = sbr.rel (0) target = $region37
    $region36: #{tpu_custom_call.1} parent=1 // pred_region
      %475 = dma.done [#allocation3], 768
    $region37: #{tpu_custom_call.1} parent=1 // pred_fallthru
      _
    %476 = vsyncpa [#allocation3], 1
    %477 = vsyncpa [#allocation4], 1

</llo_original>
